<compile_context>
chip_gen: v5e
topology: v5e:2x2
jax: 0.10.0
libtpu: 0.0.40
codegen_flags: <defaults>
</compile_context>

<pallas_src>
import functools

import jax
import jax.numpy as jnp
from jax.experimental import pallas as pl
from jax.experimental.pallas import tpu as pltpu


_LANE = 128                              # lane width: output last dim granularity
_SUBLANE = 8                             # sublane granularity for row tiles
_VMEM_LIMIT_BYTES = 32 * 1024 * 1024     # explicit scoped-VMEM limit
_VMEM_BUDGET_BYTES = 28 * 1024 * 1024    # what the tile chooser plans against


def _round_up(x, m):
    return (x + m - 1) // m * m


def sine_layer_kernel(x_ref, w_ref, b_ref, o_ref, *, omega_0):
    """One row tile: o = sin(omega_0 * (x @ w + b)).

    x_ref: (tm, K)   w_ref: (K, Np)   b_ref: (1, Np) f32   o_ref: (tm, Np)
    """
    a = x_ref[...]
    w = w_ref[...]
    if a.dtype != w.dtype:               # bf16 MXU path: match activation dtype to weight
        a = a.astype(w.dtype)
    z = jnp.dot(a, w, preferred_element_type=jnp.float32)   # f32 MXU accumulation
    z = z + b_ref[...]                                       # f32 epilogue on the VPU
    o_ref[...] = jnp.sin(omega_0 * z).astype(o_ref.dtype)


def prepare_sine_layer_params(weight, bias, *, mxu_dtype=None):
    """One-time parameter prep (do NOT call per forward).

    weight: (out_features, in_features) in PyTorch layout; bias: (out_features,).
    Transposes to (K, N) and zero-pads N up to a multiple of 128 so output
    stores are lane-dense.  Returns (w_kn, b_row, out_features).
    """
    n, k = weight.shape
    n_pad = _round_up(max(n, _LANE), _LANE)
    w_kn = jnp.zeros((k, n_pad), jnp.float32).at[:, :n].set(
        weight.T.astype(jnp.float32))
    if mxu_dtype is not None:
        w_kn = w_kn.astype(mxu_dtype)
    b_row = jnp.zeros((1, n_pad), jnp.float32).at[0, :n].set(
        bias.astype(jnp.float32))
    return w_kn, b_row, n


def _choose_tm(m, k, n_pad, x_bytes, w_bytes):
    """Largest row tile that fits the VMEM budget and keeps >= 2 grid steps."""
    # Keep the grid >= 2 (v7x has two TensorCores) unless the batch is tiny.
    half = max(_SUBLANE, _round_up(pl.cdiv(m, 2), _SUBLANE))
    for tm in (1024, 512, 256, 128, 64, 32, 16, 8):
        if tm > half and m > _SUBLANE:
            continue
        vmem = (2 * tm * k * x_bytes          # double-buffered x tiles
                + 2 * tm * n_pad * 4          # double-buffered out tiles (f32)
                + 2 * k * n_pad * w_bytes     # resident weight (double-buffered)
                + 2 * n_pad * 4)              # bias
        if vmem <= _VMEM_BUDGET_BYTES:
            return tm
    return _SUBLANE


def sine_layer_forward(x, w_kn, b_row, out_features, omega_0=30.0, *, tm=None):
    """x: (M, K); (w_kn, b_row) from prepare_sine_layer_params.

    Returns (M, out_features) = sin(omega_0 * (x @ W.T + b)).
    """
    m, k = x.shape
    kw, n_pad = w_kn.shape
    assert k == kw and n_pad % _LANE == 0

    if tm is None:
        tm = _choose_tm(m, k, n_pad, x.dtype.itemsize, w_kn.dtype.itemsize)

    m_pad = _round_up(m, tm)
    x_in = x if m_pad == m else jnp.pad(x, ((0, m_pad - m), (0, 0)))

    kernel = functools.partial(sine_layer_kernel, omega_0=float(omega_0))

    out = pl.pallas_call(
        kernel,
        out_shape=jax.ShapeDtypeStruct((m_pad, n_pad), jnp.float32),
        grid_spec=pltpu.PrefetchScalarGridSpec(
            num_scalar_prefetch=0,
            grid=(m_pad // tm,),
            in_specs=[
                pl.BlockSpec((tm, k), lambda i: (i, 0)),      # x row tile
                pl.BlockSpec((k, n_pad), lambda i: (0, 0)),   # weight, resident in VMEM
                pl.BlockSpec((1, n_pad), lambda i: (0, 0)),   # bias, resident in VMEM
            ],
            out_specs=pl.BlockSpec((tm, n_pad), lambda i: (i, 0)),  # lane-dense stores
        ),
        compiler_params=pltpu.CompilerParams(
            dimension_semantics=("parallel",),   # shard row tiles across TensorCores
            vmem_limit_bytes=_VMEM_LIMIT_BYTES,
        ),
    )(x_in, w_kn, b_row)

    return out[:m, :out_features]


def init_sine_layer_params(key, in_features, out_features, is_first, omega_0):
    """Re-implementation of SineLayer.init_weights + nn.Linear default bias init."""
    kw, kb = jax.random.split(key)
    if is_first:
        bound_w = 1.0 / in_features
    else:
        bound_w = float(jnp.sqrt(6.0 / in_features)) / omega_0
    weight = jax.random.uniform(
        kw, (out_features, in_features), jnp.float32, -bound_w, bound_w)
    bound_b = 1.0 / float(jnp.sqrt(jnp.asarray(in_features, jnp.float32)))
    bias = jax.random.uniform(kb, (out_features,), jnp.float32, -bound_b, bound_b)
    return weight, bias


if __name__ == "__main__":
    key = jax.random.PRNGKey(0)
    k_params, k_x = jax.random.split(key)

    batch = 128
    in_features = 32
    out_features = 64
    omega_0 = 30.0
    is_first = True

    weight, bias = init_sine_layer_params(
        k_params, in_features, out_features, is_first, omega_0)
    x = jax.random.uniform(k_x, (batch, in_features), jnp.float32, -1.0, 1.0)

    # One-time parameter preparation (transpose + lane-pad), then the kernel call.
    w_kn, b_row, n_out = prepare_sine_layer_params(weight, bias)
    out = sine_layer_forward(x, w_kn, b_row, n_out, omega_0)
    out = jax.block_until_ready(out)

    # Pure-JAX reference of the original PyTorch forward semantics.
    ref = jnp.sin(omega_0 * (x @ weight.T + bias))
    assert out.shape == (batch, out_features)
    assert jnp.allclose(out, ref, atol=1e-5, rtol=1e-5)

    print("KERNEL_OK")
</pallas_src>

<mosaic_0001>
module attributes {stable_mosaic.version = 11 : i64} {
  func.func @sine_layer_kernel(%arg0: i32, %arg1: memref<64x32xf32, #tpu.memory_space<vmem>>, %arg2: memref<32x128xf32, #tpu.memory_space<vmem>>, %arg3: memref<1x128xf32, #tpu.memory_space<vmem>>, %arg4: memref<64x128xf32, #tpu.memory_space<vmem>>) attributes {dimension_semantics = [#tpu.dimension_semantics<parallel>], iteration_bounds = array<i64: 2>, scalar_prefetch = 0 : i64, scratch_operands = 0 : i64, tpu.core_type = #tpu.core_type<tc>, window_params = [{transform_indices = @transform_0, window_bounds = array<i64: 64, 32>}, {pipeline_mode = #tpu.pipeline_mode<synchronous>, transform_indices = @transform_1, window_bounds = array<i64: 32, 128>}, {pipeline_mode = #tpu.pipeline_mode<synchronous>, transform_indices = @transform_2, window_bounds = array<i64: 1, 128>}, {transform_indices = @transform_3, window_bounds = array<i64: 64, 128>}]} {
    %c0 = arith.constant 0 : index
    %c0_0 = arith.constant 0 : index
    %0 = vector.load %arg1[%c0, %c0_0] : memref<64x32xf32, #tpu.memory_space<vmem>>, vector<64x32xf32>
    %c0_1 = arith.constant 0 : index
    %c0_2 = arith.constant 0 : index
    %1 = vector.load %arg2[%c0_1, %c0_2] : memref<32x128xf32, #tpu.memory_space<vmem>>, vector<32x128xf32>
    %cst = arith.constant dense<0.000000e+00> : vector<64x128xf32>
    %2 = tpu.matmul %0, %1, %cst {dimension_numbers = #tpu.dot_dimension_numbers<[1], [0], [0], [1], [0, 0, 1, 1], [], []>} : vector<64x32xf32>, vector<32x128xf32>, vector<64x128xf32> -> vector<64x128xf32>
    %c0_3 = arith.constant 0 : index
    %c0_4 = arith.constant 0 : index
    %3 = vector.load %arg3[%c0_3, %c0_4] : memref<1x128xf32, #tpu.memory_space<vmem>>, vector<1x128xf32>
    %4 = vector.broadcast %3 : vector<1x128xf32> to vector<64x128xf32>
    %5 = arith.addf %2, %4 : vector<64x128xf32>
    %cst_5 = arith.constant 3.000000e+01 : f32
    %6 = vector.broadcast %cst_5 : f32 to vector<64x128xf32>
    %7 = arith.mulf %6, %5 : vector<64x128xf32>
    %8 = math.sin %7 : vector<64x128xf32>
    %c0_6 = arith.constant 0 : index
    %c0_7 = arith.constant 0 : index
    %9 = vector.load %arg4[%c0_6, %c0_7] : memref<64x128xf32, #tpu.memory_space<vmem>>, vector<64x128xf32>
    tpu.vector_store %arg4[%c0_6, %c0_7], %8 {strides = array<i32>} : memref<64x128xf32, #tpu.memory_space<vmem>>, vector<64x128xf32>,
    return
  }
  func.func @transform_0(%arg0: i32) -> (i32, i32) {
    %c0_i32 = arith.constant 0 : i32
    %c0_i32_0 = arith.constant 0 : i32
    return %arg0, %c0_i32 : i32, i32
  }
  func.func @transform_1(%arg0: i32) -> (i32, i32) {
    %c0_i32 = arith.constant 0 : i32
    %c0_i32_0 = arith.constant 0 : i32
    %c0_i32_1 = arith.constant 0 : i32
    return %c0_i32, %c0_i32_0 : i32, i32
  }
  func.func @transform_2(%arg0: i32) -> (i32, i32) {
    %c0_i32 = arith.constant 0 : i32
    %c0_i32_0 = arith.constant 0 : i32
    %c0_i32_1 = arith.constant 0 : i32
    return %c0_i32, %c0_i32_0 : i32, i32
  }
  func.func @transform_3(%arg0: i32) -> (i32, i32) {
    %c0_i32 = arith.constant 0 : i32
    %c0_i32_0 = arith.constant 0 : i32
    return %arg0, %c0_i32 : i32, i32
  }
}

</mosaic_0001>

<llo_original>
// kernel: tpu_custom_call.1
$region0: #{tpu_custom_call.1}
  #allocation0 [shape = 'u32[]', space=smem, size = 0x4, offset = 0x4, fixed_abs, tag = 'smem constant byte address 0x4 - core index']
  #allocation1 [shape = 'u32[72,128]{1,0:T(1,128)}', space=vmem, size = 0x9000, scoped, tag = 'internal scratch']
  %s0 = inlined_call_operand.vmem [shape: f32[128,32], index: 0, kind: input, shape index: {}]
  %s1 = inlined_call_operand.vmem [shape: f32[32,128], index: 1, kind: input, shape index: {}]
  %s2 = inlined_call_operand.vmem [shape: f32[1,128], index: 2, kind: input, shape index: {}]
  %s3 = inlined_call_operand.hbm [shape: f32[128,128], index: 3, kind: output, shape index: {}]
  %s4 = sld [smem:[#allocation0]]
  $region45: #{tpu_custom_call.1} parent=0
    _
  %s6 = ssub.s32 1, %s4
  %s7 = scalar_select 0, %s6, %s4
  $region1: #{tpu_custom_call.1} parent=0
    #allocation2 [shape = 'u8[65536]{0}', space=vmem, size = 0x10000, scoped, tag = 'output window, operand 0']
    #allocation3 [shape = 's32[2]{0}', space=sflag, size = 0x8, scoped, tag = 'scoped memory for tpu_custom_call.1']
    %8 = vsyncpa [#allocation3], 0
    %s9 = scalar_lea.sflag [#allocation3], 1
    %10 = vsyncpa %s9, 0
    loop: start=0, step=1, limit=4
    $region2: #{tpu_custom_call.1} parent=1 // loop_pre_header
      _
    $region3: #{tpu_custom_call.1} parent=1 // loop_header
      %s12 = sphi 0, %s16
      %p13 = scmp.ge.s32.totalorder %s12, 4
      %s22 = sphi 0, %s24
      %s25 = sphi 0, %s22
      %s26 = sphi 0, %s25
      %s42 = sphi 0, %s26
      %s46 = sphi 0, %s46
      %s48 = sphi 0, %s46
      %s49 = sphi 0, %s48
      %s63 = sphi 0, %s49
      %s67 = sphi 0, %s67
      %s69 = sphi 0, %s67
      %s70 = sphi 0, %s69
      %s84 = sphi 0, %s70
      %s90 = sphi 0, %s92
      %s93 = sphi 0, %s90
      %s94 = sphi 0, %s93
      %s110 = sphi 0, %s94
    $region4: #{tpu_custom_call.1} parent=1 // loop_header_branch
      %15 = sbr.rel (%p13) target = $region8
    $region5: #{tpu_custom_call.1} parent=1 // loop_body
      %s17 = ssub.s32 %s12, 1
      %s18 = ssub.s32 %s12, 2
      %s19 = sadd.s32 %s12, 1
      %s20 = ssub.s32 %s12, %s19
      %p21 = scmp.eq.s32.totalorder %s20, 0
      %s23 = sadd.s32 %s22, 1
      %s24 = scalar_select %p21, %s22, %s23
      %p27 = pneg %p21
      %p28 = scmp.eq.s32.totalorder %s12, 1
      %p29 = por %p27, %p28
      %p30 = scmp.ne.s32.totalorder %s22, %s25
      %p31 = scmp.eq.s32.totalorder %s12, 0
      %p32 = por %p30, %p31
      %p33 = scmp.ne.s32.totalorder %s22, %s25
      %p34 = scmp.eq.s32.totalorder %s17, 1
      %p35 = por %p33, %p34
      %p36 = scmp.ne.s32.totalorder %s25, %s26
      %p37 = scmp.eq.s32.totalorder %s17, 0
      %p38 = por %p36, %p37
      %p39 = scmp.ne.s32.totalorder %s25, %s26
      %p40 = scmp.eq.s32.totalorder %s18, 1
      %p41 = por %p39, %p40
      %p43 = scmp.ne.s32.totalorder %s26, %s42
      %p44 = scmp.eq.s32.totalorder %s18, 0
      %p45 = por %p43, %p44
      %s47 = sadd.s32 %s46, 1
      %p50 = scmp.eq.s32.totalorder %s12, 1
      %p51 = scmp.ne.s32.totalorder %s46, %s48
      %p52 = scmp.eq.s32.totalorder %s12, 0
      %p53 = por %p51, %p52
      %p54 = scmp.ne.s32.totalorder %s46, %s48
      %p55 = scmp.eq.s32.totalorder %s17, 1
      %p56 = por %p54, %p55
      %p57 = scmp.ne.s32.totalorder %s48, %s49
      %p58 = scmp.eq.s32.totalorder %s17, 0
      %p59 = por %p57, %p58
      %p60 = scmp.ne.s32.totalorder %s48, %s49
      %p61 = scmp.eq.s32.totalorder %s18, 1
      %p62 = por %p60, %p61
      %p64 = scmp.ne.s32.totalorder %s49, %s63
      %p65 = scmp.eq.s32.totalorder %s18, 0
      %p66 = por %p64, %p65
      %s68 = sadd.s32 %s67, 1
      %p71 = scmp.eq.s32.totalorder %s12, 1
      %p72 = scmp.ne.s32.totalorder %s67, %s69
      %p73 = scmp.eq.s32.totalorder %s12, 0
      %p74 = por %p72, %p73
      %p75 = scmp.ne.s32.totalorder %s67, %s69
      %p76 = scmp.eq.s32.totalorder %s17, 1
      %p77 = por %p75, %p76
      %p78 = scmp.ne.s32.totalorder %s69, %s70
      %p79 = scmp.eq.s32.totalorder %s17, 0
      %p80 = por %p78, %p79
      %p81 = scmp.ne.s32.totalorder %s69, %s70
      %p82 = scmp.eq.s32.totalorder %s18, 1
      %p83 = por %p81, %p82
      %p85 = scmp.ne.s32.totalorder %s70, %s84
      %p86 = scmp.eq.s32.totalorder %s18, 0
      %p87 = por %p85, %p86
      %s88 = ssub.s32 %s12, %s19
      %p89 = scmp.eq.s32.totalorder %s88, 0
      %s91 = sadd.s32 %s90, 1
      %s92 = scalar_select %p89, %s90, %s91
      %p95 = pneg %p89
      %p96 = scmp.eq.s32.totalorder %s12, 1
      %p97 = por %p95, %p96
      %p98 = scmp.ne.s32.totalorder %s90, %s93
      %p99 = scmp.eq.s32.totalorder %s12, 0
      %p100 = por %p98, %p99
      %p101 = scmp.ne.s32.totalorder %s90, %s93
      %p102 = scmp.eq.s32.totalorder %s17, 1
      %p103 = por %p101, %p102
      %p104 = scmp.ne.s32.totalorder %s93, %s94
      %p105 = scmp.eq.s32.totalorder %s17, 0
      %p106 = por %p104, %p105
      %p107 = scmp.ne.s32.totalorder %s93, %s94
      %p108 = scmp.eq.s32.totalorder %s18, 1
      %p109 = por %p107, %p108
      %p111 = scmp.ne.s32.totalorder %s94, %s110
      %p112 = scmp.eq.s32.totalorder %s18, 0
      %p113 = por %p111, %p112
      %p114 = scmp.le.s32.totalorder 1, %s12
      %p115 = scmp.lt.s32.totalorder %s12, 3
      %p116 = pnand %p114, %p115
      %p117 = pneg %p116
      // Predicated region
      $region9: #{tpu_custom_call.1} parent=5 // pred_check
        _
      $region10: #{tpu_custom_call.1} parent=5 // pred_check_branch
        %119 = sbr.rel (%p116) target = $region12
      $region11: #{tpu_custom_call.1} parent=5 // pred_region
        %s120 = ssub.s32 %s12, 1
        // Predicated region
        $region13: #{tpu_custom_call.1} parent=11 // pred_check
          %p121 = pneg %p59
        $region14: #{tpu_custom_call.1} parent=11 // pred_check_branch
          %123 = sbr.rel (%p121) target = $region16
        $region15: #{tpu_custom_call.1} parent=11 // pred_region
          _
        $region16: #{tpu_custom_call.1} parent=11 // pred_fallthru
          _
        // Predicated region
        $region17: #{tpu_custom_call.1} parent=11 // pred_check
          %p124 = pneg %p80
        $region18: #{tpu_custom_call.1} parent=11 // pred_check_branch
          %126 = sbr.rel (%p124) target = $region20
        $region19: #{tpu_custom_call.1} parent=11 // pred_region
          _
        $region20: #{tpu_custom_call.1} parent=11 // pred_fallthru
          _
      $region12: #{tpu_custom_call.1} parent=5 // pred_fallthru
        _
      %p127 = scmp.lt.s32.totalorder %s12, 2
      // Predicated region
      $region21: #{tpu_custom_call.1} parent=5 // pred_check
        %p128 = pneg %p127
      $region22: #{tpu_custom_call.1} parent=5 // pred_check_branch
        %130 = sbr.rel (%p128) target = $region24
      $region23: #{tpu_custom_call.1} parent=5 // pred_region
        // Predicated region
        $region25: #{tpu_custom_call.1} parent=23 // pred_check
          %p131 = pneg %p32
        $region26: #{tpu_custom_call.1} parent=23 // pred_check_branch
          %133 = sbr.rel (%p131) target = $region28
        $region27: #{tpu_custom_call.1} parent=23 // pred_region
          %s134 = smul.u32 8, %s12
          %p135 = scmp.lt.s32.totalorder %s134, 15
          %s136 = scalar_select %p135, %s134, 15
          %s137 = smul.addr %s136, 8
          %s138 = scalar_lea.vmem %s0, %s137
          %s139 = smul.u32 8, %s12
        $region28: #{tpu_custom_call.1} parent=23 // pred_fallthru
          _
      $region24: #{tpu_custom_call.1} parent=5 // pred_fallthru
        _
      %p140 = scmp.le.s32.totalorder 1, %s12
      %p141 = scmp.lt.s32.totalorder %s12, 3
      %p142 = pnand %p140, %p141
      %p143 = pneg %p142
      // Predicated region
      $region29: #{tpu_custom_call.1} parent=5 // pred_check
        _
      $region30: #{tpu_custom_call.1} parent=5 // pred_check_branch
        %145 = sbr.rel (%p142) target = $region32
      $region31: #{tpu_custom_call.1} parent=5 // pred_region
        %s146 = ssub.s32 %s12, 1
        %s147 = smul.u32 8, %s17
        %p148 = scmp.lt.s32.totalorder %s147, 15
        %s149 = scalar_select %p148, %s147, 15
        %s150 = smul.addr %s149, 8
        %s151 = scalar_lea.vmem %s0, %s150
        %p152 = pneg %p38
        %p153 = pneg %p35
        %p154 = pneg %p59
        %p155 = pneg %p56
        %p156 = pneg %p80
        %p157 = pneg %p77
        %p158 = pneg %p106
        %p159 = pneg %p103
        %s160 = sand.u32 %s93, 1
        %s161 = scalar_lea.sflag [#allocation3], %s160
        %s162 = sand.u32 %s93, 1
        %s163 = smul.addr %s162, 64
        %s164 = scalar_lea.vmem [#allocation2], %s163
        %s165 = smul.u32 8, %s17
        %p166 = scmp.lt.s32.totalorder %s165, 15
        %s167 = scalar_select %p166, %s165, 15
        %s168 = smul.addr %s167, 8
        %s169 = scalar_lea.vmem %s0, %s168
        %s170 = smul.u32 8, %s17
        %s171 = smul.u32 8, %s17
        %v172 = vld [vmem:[%s169] sm:$0xff]
        %v173 = vld [vmem:[%s169 + $0x8] sm:$0xff]
        %v174 = vld [vmem:[%s169 + $0x10] sm:$0xff]
        %v175 = vld [vmem:[%s169 + $0x18] sm:$0xff]
        %v176 = vld [vmem:[%s169 + $0x20] sm:$0xff]
        %v177 = vld [vmem:[%s169 + $0x28] sm:$0xff]
        %v178 = vld [vmem:[%s169 + $0x30] sm:$0xff]
        %v179 = vld [vmem:[%s169 + $0x38] sm:$0xff]
        %v180 = vld [vmem:[%s1] sm:$0xff]
        %v181 = vld [vmem:[%s1 + $0x8] sm:$0xff]
        %v182 = vld [vmem:[%s1 + $0x10] sm:$0xff]
        %v183 = vld [vmem:[%s1 + $0x18] sm:$0xff]
        %v184 = vld [vmem:[%s2] sm:$0x1]
        %v186 = vperm.slane %v184, 0
        %vm188 = vcmask 261120
        %v190 = vsel %vm188, %v172, 0
        %v193 = vsel %vm188, %v173, 0
        %v196 = vsel %vm188, %v174, 0
        %v199 = vsel %vm188, %v175, 0
        %v202 = vsel %vm188, %v176, 0
        %v205 = vsel %vm188, %v177, 0
        %v208 = vsel %vm188, %v178, 0
        %v211 = vsel %vm188, %v179, 0
        %213 = vmatpush.msra.mxu0 0.0
        %214 = vmatpush.msra.mxu0 0.0
        %215 = vmatpush.msra.mxu0 0.0
        %216 = vmatpush.msra.mxu0 0.0
        %217 = vmatpush.msra.mxu0 0.0
        %218 = vmatpush.msra.mxu0 0.0
        %219 = vmatpush.msra.mxu0 0.0
        %220 = vmatpush.msra.mxu0 0.0
        %221 = vmatpush.msra.mxu0 0.0
        %222 = vmatpush.msra.mxu0 0.0
        %223 = vmatpush.msra.mxu0 0.0
        %224 = vmatpush.msra.mxu0 0.0
        %225 = vmatpush.msra.mxu0 %v183
        %226 = vmatpush.msra.mxu0 %v182
        %227 = vmatpush.msra.mxu0 %v181
        %228 = vmatpush.msra.mxu0 %v180
        %229 = vmatmul.f32.gmra.mxu0 %v190
        %v230 = vpop.f32.mrf.mxu0
        %v231 = vadd.f32 %v186, %v230
        %232 = vmatmul.f32.gmra.mxu0 %v193
        %v233 = vpop.f32.mrf.mxu0
        %v234 = vadd.f32 %v186, %v233
        %235 = vmatmul.f32.gmra.mxu0 %v196
        %v236 = vpop.f32.mrf.mxu0
        %v237 = vadd.f32 %v186, %v236
        %238 = vmatmul.f32.gmra.mxu0 %v199
        %v239 = vpop.f32.mrf.mxu0
        %v240 = vadd.f32 %v186, %v239
        %241 = vmatmul.f32.gmra.mxu0 %v202
        %v242 = vpop.f32.mrf.mxu0
        %v243 = vadd.f32 %v186, %v242
        %244 = vmatmul.f32.gmra.mxu0 %v205
        %v245 = vpop.f32.mrf.mxu0
        %v246 = vadd.f32 %v186, %v245
        %247 = vmatmul.f32.gmra.mxu0 %v208
        %v248 = vpop.f32.mrf.mxu0
        %v249 = vadd.f32 %v186, %v248
        %250 = vmatmul.f32.gmra.mxu0 %v211
        %v251 = vpop.f32.mrf.mxu0
        %v252 = vadd.f32 %v186, %v251
        %253 = vdwg.mxu0
        %v254 = vmul.f32 %v231, 30.0
        %v255 = vmul.f32 %v234, 30.0
        %v256 = vmul.f32 %v237, 30.0
        %v257 = vmul.f32 %v240, 30.0
        %v258 = vmul.f32 %v243, 30.0
        %v259 = vmul.f32 %v246, 30.0
        %v260 = vmul.f32 %v249, 30.0
        %v261 = vmul.f32 %v252, 30.0
        %v262 = vand.u32 2147483647, %v254
        %vm263 = vcmp.le.f32.partialorder %v262, 0.7853982
        %vm264 = vcmp.lt.s32.totalorder %v254, 0
        %v265 = vand.u32 %v254, 2139095040
        %v266 = vshrl.u32 %v265, 23
        %v267 = vsub.s32 %v266, 127
        %v268 = vand.u32 2147483647, %v254
        %v269 = vand.u32 %v268, 8388607
        %v270 = vor.u32 %v269, 8388608
        %v271 = vsub.s32 0, %v270
        %v272 = vadd.s32 %v267, 1
        %vm273 = vcmp.gt.s32.totalorder %v272, 0
        %v274 = vsel %vm273, %v272, 0
        %v275 = vshrl.u32 %v274, 5
        %v276 = vand.u32 %v274, 31
        %v277 = vsub.s32 32, %v276
        %v278 = vshrl.u32 683565275, %v277
        %v279 = vshll.u32 683565275, %v276
        %v280 = vshrl.u32 2475754826, %v277
        %v281 = vor.u32 %v279, %v280
        %v282 = vshll.u32 2475754826, %v276
        %v283 = vshrl.u32 2131351028, %v277
        %v284 = vor.u32 %v282, %v283
        %v285 = vshll.u32 2131351028, %v276
        %v286 = vshrl.u32 2102212464, %v277
        %v287 = vor.u32 %v285, %v286
        %v288 = vshll.u32 2102212464, %v276
        %v289 = vshrl.u32 920167782, %v277
        %v290 = vor.u32 %v288, %v289
        %v291 = vshll.u32 920167782, %v276
        %v292 = vshrl.u32 1326507024, %v277
        %v293 = vor.u32 %v291, %v292
        %vm294 = vcmp.lt.s32.totalorder %v275, 1
        %vm295 = vcmp.lt.s32.totalorder %v275, 2
        %vm296 = vcmp.lt.s32.totalorder %v275, 3
        %vm297 = vcmp.lt.s32.totalorder %v275, 4
        %v298 = vsel %vm294, %v278, %v281
        %v299 = vsel %vm297, %v287, 2102212464
        %v300 = vsel %vm296, %v284, %v299
        %v301 = vsel %vm295, %v298, %v300
        %v302 = vsel %vm294, %v281, %v284
        %v303 = vsel %vm297, %v290, 920167782
        %v304 = vsel %vm296, %v287, %v303
        %v305 = vsel %vm295, %v302, %v304
        %v306 = vsel %vm294, %v284, %v287
        %v307 = vsel %vm297, %v293, 1326507024
        %v308 = vsel %vm296, %v290, %v307
        %v309 = vsel %vm295, %v306, %v308
        %v310 = vshll.u32 %v270, 8
        %v311 = vand.u32 %v310, 65535
        %v312 = vshrl.u32 %v310, 16
        %v313 = vand.u32 %v309, 65535
        %v314 = vshrl.u32 %v309, 16
        %v315 = vmul.u32 %v311, %v313
        %v316 = vmul.u32 %v311, %v314
        %v317 = vmul.u32 %v312, %v313
        %v318 = vmul.u32 %v312, %v314
        %v319 = vshll.u32 %v316, 16
        %v320 = vshrl.u32 %v316, 16
        %v321 = vshll.u32 %v317, 16
        %v322 = vshrl.u32 %v317, 16
        %vm323 = vc.u32 %v315, %v319
        %v324 = vsel %vm323, 1, 0
        %v325 = vadd.s32 %v315, %v319
        %v326 = vadd.s32 %v318, %v324
        %vm327 = vc.u32 %v325, %v321
        %v328 = vsel %vm327, 1, 0
        %v329 = vadd.s32 %v325, %v321
        %v330 = vadd.s32 %v326, %v328
        %v331 = vadd.s32 %v330, %v320
        %v332 = vadd.s32 %v331, %v322
        %v333 = vand.u32 %v310, 65535
        %v334 = vshrl.u32 %v310, 16
        %v335 = vand.u32 %v305, 65535
        %v336 = vshrl.u32 %v305, 16
        %v337 = vmul.u32 %v333, %v335
        %v338 = vmul.u32 %v333, %v336
        %v339 = vmul.u32 %v334, %v335
        %v340 = vmul.u32 %v334, %v336
        %v341 = vshll.u32 %v338, 16
        %v342 = vshrl.u32 %v338, 16
        %v343 = vshll.u32 %v339, 16
        %v344 = vshrl.u32 %v339, 16
        %vm345 = vc.u32 %v337, %v341
        %v346 = vsel %vm345, 1, 0
        %v347 = vadd.s32 %v337, %v341
        %v348 = vadd.s32 %v340, %v346
        %vm349 = vc.u32 %v347, %v343
        %v350 = vsel %vm349, 1, 0
        %v351 = vadd.s32 %v347, %v343
        %v352 = vadd.s32 %v348, %v350
        %v353 = vadd.s32 %v352, %v342
        %v354 = vadd.s32 %v353, %v344
        %v355 = vmul.u32 %v310, %v301
        %v356 = vadd.s32 %v332, %v351
        %vm357 = vc.u32 %v332, %v351
        %v358 = vadd.s32 %v354, 1
        %v359 = vsel %vm357, %v358, %v354
        %v360 = vadd.s32 %v355, %v359
        %v361 = vadd.s32 %v360, 536870912
        %v362 = vshrl.u32 %v361, 30
        %v363 = vshll.u32 %v362, 30
        %v364 = vsub.s32 %v360, %v363
        %vm365 = vcmp.lt.s32.totalorder %v364, 0
        %v366 = vsub.s32 0, %v364
        %v367 = vsel %vm365, %v366, %v364
        %v368 = vclz %v367
        %v369 = vsub.s32 %v368, 2
        %vm370 = vcmp.gt.s32.totalorder 0, %v369
        %v371 = vsel %vm370, 0, %v369
        %v372 = vsub.s32 32, %v371
        %v373 = vshll.u32 %v364, %v371
        %v374 = vshrl.u32 %v356, %v372
        %v375 = vor.u32 %v373, %v374
        %v376 = vsub.s32 4294967266, %v371
        %v377 = vadd.s32 %v376, 127
        %v378 = vshll.u32 %v377, 23
        %v379 = vor.u32 4788187, %v378
        %v380 = vand.u32 2147483647, %v379
        %v382 = vcvt.s32.f32 %v375
        %v383 = vmul.f32 %v382, %v380
        %v384 = vxor.u32 %v383, 2147483648
        %v385 = vsel %vm264, %v384, %v383
        %v386 = vsub.s32 4, %v362
        %v387 = vsel %vm264, %v386, %v362
        %v388 = vsel %vm263, %v254, %v385
        %v389 = vsel %vm263, 0, %v387
        %v390 = vmul.f32 %v388, %v388
        %v391 = vmul.f32 %v390, -0.001358992
        %v392 = vadd.f32 %v391, 0.041655596
        %v393 = vmul.f32 %v390, %v392
        %v394 = vadd.f32 %v393, -0.4999988
        %v395 = vmul.f32 %v390, %v394
        %v396 = vadd.f32 1.0, %v395
        %v397 = vmul.f32 %v388, %v388
        %v398 = vmul.f32 %v397, -0.00019511016
        %v399 = vadd.f32 %v398, 0.008332121
        %v400 = vmul.f32 %v397, %v399
        %v401 = vadd.f32 %v400, -0.16666654
        %v402 = vmul.f32 %v397, %v401
        %v403 = vadd.f32 %v402, 1.0
        %v404 = vmul.f32 %v403, %v388
        %vm405 = vweird.f32 %v254
        %v406 = vadd.s32 %v389, 3
        %v407 = vand.u32 %v406, 3
        %vm408 = vcmp.lt.s32.totalorder %v407, 2
        %vm409 = vcmp.eq.s32.totalorder %v407, 0
        %v410 = vxor.u32 %v404, 2147483648
        %v411 = vsel %vm409, %v396, %v410
        %vm412 = vcmp.eq.s32.totalorder %v407, 2
        %v413 = vxor.u32 %v396, 2147483648
        %v414 = vsel %vm412, %v413, %v404
        %v415 = vsel %vm408, %v411, %v414
        %v416 = vsel %vm405, nan, %v415
        %v417 = vand.u32 2147483647, %v255
        %vm418 = vcmp.le.f32.partialorder %v417, 0.7853982
        %vm419 = vcmp.lt.s32.totalorder %v255, 0
        %v420 = vand.u32 %v255, 2139095040
        %v421 = vshrl.u32 %v420, 23
        %v422 = vsub.s32 %v421, 127
        %v423 = vand.u32 2147483647, %v255
        %v424 = vand.u32 %v423, 8388607
        %v425 = vor.u32 %v424, 8388608
        %v426 = vsub.s32 0, %v425
        %v427 = vadd.s32 %v422, 1
        %vm428 = vcmp.gt.s32.totalorder %v427, 0
        %v429 = vsel %vm428, %v427, 0
        %v430 = vshrl.u32 %v429, 5
        %v431 = vand.u32 %v429, 31
        %v432 = vsub.s32 32, %v431
        %v433 = vshrl.u32 683565275, %v432
        %v434 = vshll.u32 683565275, %v431
        %v435 = vshrl.u32 2475754826, %v432
        %v436 = vor.u32 %v434, %v435
        %v437 = vshll.u32 2475754826, %v431
        %v438 = vshrl.u32 2131351028, %v432
        %v439 = vor.u32 %v437, %v438
        %v440 = vshll.u32 2131351028, %v431
        %v441 = vshrl.u32 2102212464, %v432
        %v442 = vor.u32 %v440, %v441
        %v443 = vshll.u32 2102212464, %v431
        %v444 = vshrl.u32 920167782, %v432
        %v445 = vor.u32 %v443, %v444
        %v446 = vshll.u32 920167782, %v431
        %v447 = vshrl.u32 1326507024, %v432
        %v448 = vor.u32 %v446, %v447
        %vm449 = vcmp.lt.s32.totalorder %v430, 1
        %vm450 = vcmp.lt.s32.totalorder %v430, 2
        %vm451 = vcmp.lt.s32.totalorder %v430, 3
        %vm452 = vcmp.lt.s32.totalorder %v430, 4
        %v453 = vsel %vm449, %v433, %v436
        %v454 = vsel %vm452, %v442, 2102212464
        %v455 = vsel %vm451, %v439, %v454
        %v456 = vsel %vm450, %v453, %v455
        %v457 = vsel %vm449, %v436, %v439
        %v458 = vsel %vm452, %v445, 920167782
        %v459 = vsel %vm451, %v442, %v458
        %v460 = vsel %vm450, %v457, %v459
        %v461 = vsel %vm449, %v439, %v442
        %v462 = vsel %vm452, %v448, 1326507024
        %v463 = vsel %vm451, %v445, %v462
        %v464 = vsel %vm450, %v461, %v463
        %v465 = vshll.u32 %v425, 8
        %v466 = vand.u32 %v465, 65535
        %v467 = vshrl.u32 %v465, 16
        %v468 = vand.u32 %v464, 65535
        %v469 = vshrl.u32 %v464, 16
        %v470 = vmul.u32 %v466, %v468
        %v471 = vmul.u32 %v466, %v469
        %v472 = vmul.u32 %v467, %v468
        %v473 = vmul.u32 %v467, %v469
        %v474 = vshll.u32 %v471, 16
        %v475 = vshrl.u32 %v471, 16
        %v476 = vshll.u32 %v472, 16
        %v477 = vshrl.u32 %v472, 16
        %vm478 = vc.u32 %v470, %v474
        %v479 = vsel %vm478, 1, 0
        %v480 = vadd.s32 %v470, %v474
        %v481 = vadd.s32 %v473, %v479
        %vm482 = vc.u32 %v480, %v476
        %v483 = vsel %vm482, 1, 0
        %v484 = vadd.s32 %v480, %v476
        %v485 = vadd.s32 %v481, %v483
        %v486 = vadd.s32 %v485, %v475
        %v487 = vadd.s32 %v486, %v477
        %v488 = vand.u32 %v465, 65535
        %v489 = vshrl.u32 %v465, 16
        %v490 = vand.u32 %v460, 65535
        %v491 = vshrl.u32 %v460, 16
        %v492 = vmul.u32 %v488, %v490
        %v493 = vmul.u32 %v488, %v491
        %v494 = vmul.u32 %v489, %v490
        %v495 = vmul.u32 %v489, %v491
        %v496 = vshll.u32 %v493, 16
        %v497 = vshrl.u32 %v493, 16
        %v498 = vshll.u32 %v494, 16
        %v499 = vshrl.u32 %v494, 16
        %vm500 = vc.u32 %v492, %v496
        %v501 = vsel %vm500, 1, 0
        %v502 = vadd.s32 %v492, %v496
        %v503 = vadd.s32 %v495, %v501
        %vm504 = vc.u32 %v502, %v498
        %v505 = vsel %vm504, 1, 0
        %v506 = vadd.s32 %v502, %v498
        %v507 = vadd.s32 %v503, %v505
        %v508 = vadd.s32 %v507, %v497
        %v509 = vadd.s32 %v508, %v499
        %v510 = vmul.u32 %v465, %v456
        %v511 = vadd.s32 %v487, %v506
        %vm512 = vc.u32 %v487, %v506
        %v513 = vadd.s32 %v509, 1
        %v514 = vsel %vm512, %v513, %v509
        %v515 = vadd.s32 %v510, %v514
        %v516 = vadd.s32 %v515, 536870912
        %v517 = vshrl.u32 %v516, 30
        %v518 = vshll.u32 %v517, 30
        %v519 = vsub.s32 %v515, %v518
        %vm520 = vcmp.lt.s32.totalorder %v519, 0
        %v521 = vsub.s32 0, %v519
        %v522 = vsel %vm520, %v521, %v519
        %v523 = vclz %v522
        %v524 = vsub.s32 %v523, 2
        %vm525 = vcmp.gt.s32.totalorder 0, %v524
        %v526 = vsel %vm525, 0, %v524
        %v527 = vsub.s32 32, %v526
        %v528 = vshll.u32 %v519, %v526
        %v529 = vshrl.u32 %v511, %v527
        %v530 = vor.u32 %v528, %v529
        %v531 = vsub.s32 4294967266, %v526
        %v532 = vadd.s32 %v531, 127
        %v533 = vshll.u32 %v532, 23
        %v534 = vor.u32 4788187, %v533
        %v535 = vand.u32 2147483647, %v534
        %v537 = vcvt.s32.f32 %v530
        %v538 = vmul.f32 %v537, %v535
        %v539 = vxor.u32 %v538, 2147483648
        %v540 = vsel %vm419, %v539, %v538
        %v541 = vsub.s32 4, %v517
        %v542 = vsel %vm419, %v541, %v517
        %v543 = vsel %vm418, %v255, %v540
        %v544 = vsel %vm418, 0, %v542
        %v545 = vmul.f32 %v543, %v543
        %v546 = vmul.f32 %v545, -0.001358992
        %v547 = vadd.f32 %v546, 0.041655596
        %v548 = vmul.f32 %v545, %v547
        %v549 = vadd.f32 %v548, -0.4999988
        %v550 = vmul.f32 %v545, %v549
        %v551 = vadd.f32 1.0, %v550
        %v552 = vmul.f32 %v543, %v543
        %v553 = vmul.f32 %v552, -0.00019511016
        %v554 = vadd.f32 %v553, 0.008332121
        %v555 = vmul.f32 %v552, %v554
        %v556 = vadd.f32 %v555, -0.16666654
        %v557 = vmul.f32 %v552, %v556
        %v558 = vadd.f32 %v557, 1.0
        %v559 = vmul.f32 %v558, %v543
        %vm560 = vweird.f32 %v255
        %v561 = vadd.s32 %v544, 3
        %v562 = vand.u32 %v561, 3
        %vm563 = vcmp.lt.s32.totalorder %v562, 2
        %vm564 = vcmp.eq.s32.totalorder %v562, 0
        %v565 = vxor.u32 %v559, 2147483648
        %v566 = vsel %vm564, %v551, %v565
        %vm567 = vcmp.eq.s32.totalorder %v562, 2
        %v568 = vxor.u32 %v551, 2147483648
        %v569 = vsel %vm567, %v568, %v559
        %v570 = vsel %vm563, %v566, %v569
        %v571 = vsel %vm560, nan, %v570
        %v572 = vand.u32 2147483647, %v256
        %vm573 = vcmp.le.f32.partialorder %v572, 0.7853982
        %vm574 = vcmp.lt.s32.totalorder %v256, 0
        %v575 = vand.u32 %v256, 2139095040
        %v576 = vshrl.u32 %v575, 23
        %v577 = vsub.s32 %v576, 127
        %v578 = vand.u32 2147483647, %v256
        %v579 = vand.u32 %v578, 8388607
        %v580 = vor.u32 %v579, 8388608
        %v581 = vsub.s32 0, %v580
        %v582 = vadd.s32 %v577, 1
        %vm583 = vcmp.gt.s32.totalorder %v582, 0
        %v584 = vsel %vm583, %v582, 0
        %v585 = vshrl.u32 %v584, 5
        %v586 = vand.u32 %v584, 31
        %v587 = vsub.s32 32, %v586
        %v588 = vshrl.u32 683565275, %v587
        %v589 = vshll.u32 683565275, %v586
        %v590 = vshrl.u32 2475754826, %v587
        %v591 = vor.u32 %v589, %v590
        %v592 = vshll.u32 2475754826, %v586
        %v593 = vshrl.u32 2131351028, %v587
        %v594 = vor.u32 %v592, %v593
        %v595 = vshll.u32 2131351028, %v586
        %v596 = vshrl.u32 2102212464, %v587
        %v597 = vor.u32 %v595, %v596
        %v598 = vshll.u32 2102212464, %v586
        %v599 = vshrl.u32 920167782, %v587
        %v600 = vor.u32 %v598, %v599
        %v601 = vshll.u32 920167782, %v586
        %v602 = vshrl.u32 1326507024, %v587
        %v603 = vor.u32 %v601, %v602
        %vm604 = vcmp.lt.s32.totalorder %v585, 1
        %vm605 = vcmp.lt.s32.totalorder %v585, 2
        %vm606 = vcmp.lt.s32.totalorder %v585, 3
        %vm607 = vcmp.lt.s32.totalorder %v585, 4
        %v608 = vsel %vm604, %v588, %v591
        %v609 = vsel %vm607, %v597, 2102212464
        %v610 = vsel %vm606, %v594, %v609
        %v611 = vsel %vm605, %v608, %v610
        %v612 = vsel %vm604, %v591, %v594
        %v613 = vsel %vm607, %v600, 920167782
        %v614 = vsel %vm606, %v597, %v613
        %v615 = vsel %vm605, %v612, %v614
        %v616 = vsel %vm604, %v594, %v597
        %v617 = vsel %vm607, %v603, 1326507024
        %v618 = vsel %vm606, %v600, %v617
        %v619 = vsel %vm605, %v616, %v618
        %v620 = vshll.u32 %v580, 8
        %v621 = vand.u32 %v620, 65535
        %v622 = vshrl.u32 %v620, 16
        %v623 = vand.u32 %v619, 65535
        %v624 = vshrl.u32 %v619, 16
        %v625 = vmul.u32 %v621, %v623
        %v626 = vmul.u32 %v621, %v624
        %v627 = vmul.u32 %v622, %v623
        %v628 = vmul.u32 %v622, %v624
        %v629 = vshll.u32 %v626, 16
        %v630 = vshrl.u32 %v626, 16
        %v631 = vshll.u32 %v627, 16
        %v632 = vshrl.u32 %v627, 16
        %vm633 = vc.u32 %v625, %v629
        %v634 = vsel %vm633, 1, 0
        %v635 = vadd.s32 %v625, %v629
        %v636 = vadd.s32 %v628, %v634
        %vm637 = vc.u32 %v635, %v631
        %v638 = vsel %vm637, 1, 0
        %v639 = vadd.s32 %v635, %v631
        %v640 = vadd.s32 %v636, %v638
        %v641 = vadd.s32 %v640, %v630
        %v642 = vadd.s32 %v641, %v632
        %v643 = vand.u32 %v620, 65535
        %v644 = vshrl.u32 %v620, 16
        %v645 = vand.u32 %v615, 65535
        %v646 = vshrl.u32 %v615, 16
        %v647 = vmul.u32 %v643, %v645
        %v648 = vmul.u32 %v643, %v646
        %v649 = vmul.u32 %v644, %v645
        %v650 = vmul.u32 %v644, %v646
        %v651 = vshll.u32 %v648, 16
        %v652 = vshrl.u32 %v648, 16
        %v653 = vshll.u32 %v649, 16
        %v654 = vshrl.u32 %v649, 16
        %vm655 = vc.u32 %v647, %v651
        %v656 = vsel %vm655, 1, 0
        %v657 = vadd.s32 %v647, %v651
        %v658 = vadd.s32 %v650, %v656
        %vm659 = vc.u32 %v657, %v653
        %v660 = vsel %vm659, 1, 0
        %v661 = vadd.s32 %v657, %v653
        %v662 = vadd.s32 %v658, %v660
        %v663 = vadd.s32 %v662, %v652
        %v664 = vadd.s32 %v663, %v654
        %v665 = vmul.u32 %v620, %v611
        %v666 = vadd.s32 %v642, %v661
        %vm667 = vc.u32 %v642, %v661
        %v668 = vadd.s32 %v664, 1
        %v669 = vsel %vm667, %v668, %v664
        %v670 = vadd.s32 %v665, %v669
        %v671 = vadd.s32 %v670, 536870912
        %v672 = vshrl.u32 %v671, 30
        %v673 = vshll.u32 %v672, 30
        %v674 = vsub.s32 %v670, %v673
        %vm675 = vcmp.lt.s32.totalorder %v674, 0
        %v676 = vsub.s32 0, %v674
        %v677 = vsel %vm675, %v676, %v674
        %v678 = vclz %v677
        %v679 = vsub.s32 %v678, 2
        %vm680 = vcmp.gt.s32.totalorder 0, %v679
        %v681 = vsel %vm680, 0, %v679
        %v682 = vsub.s32 32, %v681
        %v683 = vshll.u32 %v674, %v681
        %v684 = vshrl.u32 %v666, %v682
        %v685 = vor.u32 %v683, %v684
        %v686 = vsub.s32 4294967266, %v681
        %v687 = vadd.s32 %v686, 127
        %v688 = vshll.u32 %v687, 23
        %v689 = vor.u32 4788187, %v688
        %v690 = vand.u32 2147483647, %v689
        %v692 = vcvt.s32.f32 %v685
        %v693 = vmul.f32 %v692, %v690
        %v694 = vxor.u32 %v693, 2147483648
        %v695 = vsel %vm574, %v694, %v693
        %v696 = vsub.s32 4, %v672
        %v697 = vsel %vm574, %v696, %v672
        %v698 = vsel %vm573, %v256, %v695
        %v699 = vsel %vm573, 0, %v697
        %v700 = vmul.f32 %v698, %v698
        %v701 = vmul.f32 %v700, -0.001358992
        %v702 = vadd.f32 %v701, 0.041655596
        %v703 = vmul.f32 %v700, %v702
        %v704 = vadd.f32 %v703, -0.4999988
        %v705 = vmul.f32 %v700, %v704
        %v706 = vadd.f32 1.0, %v705
        %v707 = vmul.f32 %v698, %v698
        %v708 = vmul.f32 %v707, -0.00019511016
        %v709 = vadd.f32 %v708, 0.008332121
        %v710 = vmul.f32 %v707, %v709
        %v711 = vadd.f32 %v710, -0.16666654
        %v712 = vmul.f32 %v707, %v711
        %v713 = vadd.f32 %v712, 1.0
        %v714 = vmul.f32 %v713, %v698
        %vm715 = vweird.f32 %v256
        %v716 = vadd.s32 %v699, 3
        %v717 = vand.u32 %v716, 3
        %vm718 = vcmp.lt.s32.totalorder %v717, 2
        %vm719 = vcmp.eq.s32.totalorder %v717, 0
        %v720 = vxor.u32 %v714, 2147483648
        %v721 = vsel %vm719, %v706, %v720
        %vm722 = vcmp.eq.s32.totalorder %v717, 2
        %v723 = vxor.u32 %v706, 2147483648
        %v724 = vsel %vm722, %v723, %v714
        %v725 = vsel %vm718, %v721, %v724
        %v726 = vsel %vm715, nan, %v725
        %v727 = vand.u32 2147483647, %v257
        %vm728 = vcmp.le.f32.partialorder %v727, 0.7853982
        %vm729 = vcmp.lt.s32.totalorder %v257, 0
        %v730 = vand.u32 %v257, 2139095040
        %v731 = vshrl.u32 %v730, 23
        %v732 = vsub.s32 %v731, 127
        %v733 = vand.u32 2147483647, %v257
        %v734 = vand.u32 %v733, 8388607
        %v735 = vor.u32 %v734, 8388608
        %v736 = vsub.s32 0, %v735
        %v737 = vadd.s32 %v732, 1
        %vm738 = vcmp.gt.s32.totalorder %v737, 0
        %v739 = vsel %vm738, %v737, 0
        %v740 = vshrl.u32 %v739, 5
        %v741 = vand.u32 %v739, 31
        %v742 = vsub.s32 32, %v741
        %v743 = vshrl.u32 683565275, %v742
        %v744 = vshll.u32 683565275, %v741
        %v745 = vshrl.u32 2475754826, %v742
        %v746 = vor.u32 %v744, %v745
        %v747 = vshll.u32 2475754826, %v741
        %v748 = vshrl.u32 2131351028, %v742
        %v749 = vor.u32 %v747, %v748
        %v750 = vshll.u32 2131351028, %v741
        %v751 = vshrl.u32 2102212464, %v742
        %v752 = vor.u32 %v750, %v751
        %v753 = vshll.u32 2102212464, %v741
        %v754 = vshrl.u32 920167782, %v742
        %v755 = vor.u32 %v753, %v754
        %v756 = vshll.u32 920167782, %v741
        %v757 = vshrl.u32 1326507024, %v742
        %v758 = vor.u32 %v756, %v757
        %vm759 = vcmp.lt.s32.totalorder %v740, 1
        %vm760 = vcmp.lt.s32.totalorder %v740, 2
        %vm761 = vcmp.lt.s32.totalorder %v740, 3
        %vm762 = vcmp.lt.s32.totalorder %v740, 4
        %v763 = vsel %vm759, %v743, %v746
        %v764 = vsel %vm762, %v752, 2102212464
        %v765 = vsel %vm761, %v749, %v764
        %v766 = vsel %vm760, %v763, %v765
        %v767 = vsel %vm759, %v746, %v749
        %v768 = vsel %vm762, %v755, 920167782
        %v769 = vsel %vm761, %v752, %v768
        %v770 = vsel %vm760, %v767, %v769
        %v771 = vsel %vm759, %v749, %v752
        %v772 = vsel %vm762, %v758, 1326507024
        %v773 = vsel %vm761, %v755, %v772
        %v774 = vsel %vm760, %v771, %v773
        %v775 = vshll.u32 %v735, 8
        %v776 = vand.u32 %v775, 65535
        %v777 = vshrl.u32 %v775, 16
        %v778 = vand.u32 %v774, 65535
        %v779 = vshrl.u32 %v774, 16
        %v780 = vmul.u32 %v776, %v778
        %v781 = vmul.u32 %v776, %v779
        %v782 = vmul.u32 %v777, %v778
        %v783 = vmul.u32 %v777, %v779
        %v784 = vshll.u32 %v781, 16
        %v785 = vshrl.u32 %v781, 16
        %v786 = vshll.u32 %v782, 16
        %v787 = vshrl.u32 %v782, 16
        %vm788 = vc.u32 %v780, %v784
        %v789 = vsel %vm788, 1, 0
        %v790 = vadd.s32 %v780, %v784
        %v791 = vadd.s32 %v783, %v789
        %vm792 = vc.u32 %v790, %v786
        %v793 = vsel %vm792, 1, 0
        %v794 = vadd.s32 %v790, %v786
        %v795 = vadd.s32 %v791, %v793
        %v796 = vadd.s32 %v795, %v785
        %v797 = vadd.s32 %v796, %v787
        %v798 = vand.u32 %v775, 65535
        %v799 = vshrl.u32 %v775, 16
        %v800 = vand.u32 %v770, 65535
        %v801 = vshrl.u32 %v770, 16
        %v802 = vmul.u32 %v798, %v800
        %v803 = vmul.u32 %v798, %v801
        %v804 = vmul.u32 %v799, %v800
        %v805 = vmul.u32 %v799, %v801
        %v806 = vshll.u32 %v803, 16
        %v807 = vshrl.u32 %v803, 16
        %v808 = vshll.u32 %v804, 16
        %v809 = vshrl.u32 %v804, 16
        %vm810 = vc.u32 %v802, %v806
        %v811 = vsel %vm810, 1, 0
        %v812 = vadd.s32 %v802, %v806
        %v813 = vadd.s32 %v805, %v811
        %vm814 = vc.u32 %v812, %v808
        %v815 = vsel %vm814, 1, 0
        %v816 = vadd.s32 %v812, %v808
        %v817 = vadd.s32 %v813, %v815
        %v818 = vadd.s32 %v817, %v807
        %v819 = vadd.s32 %v818, %v809
        %v820 = vmul.u32 %v775, %v766
        %v821 = vadd.s32 %v797, %v816
        %vm822 = vc.u32 %v797, %v816
        %v823 = vadd.s32 %v819, 1
        %v824 = vsel %vm822, %v823, %v819
        %v825 = vadd.s32 %v820, %v824
        %v826 = vadd.s32 %v825, 536870912
        %v827 = vshrl.u32 %v826, 30
        %v828 = vshll.u32 %v827, 30
        %v829 = vsub.s32 %v825, %v828
        %vm830 = vcmp.lt.s32.totalorder %v829, 0
        %v831 = vsub.s32 0, %v829
        %v832 = vsel %vm830, %v831, %v829
        %v833 = vclz %v832
        %v834 = vsub.s32 %v833, 2
        %vm835 = vcmp.gt.s32.totalorder 0, %v834
        %v836 = vsel %vm835, 0, %v834
        %v837 = vsub.s32 32, %v836
        %v838 = vshll.u32 %v829, %v836
        %v839 = vshrl.u32 %v821, %v837
        %v840 = vor.u32 %v838, %v839
        %v841 = vsub.s32 4294967266, %v836
        %v842 = vadd.s32 %v841, 127
        %v843 = vshll.u32 %v842, 23
        %v844 = vor.u32 4788187, %v843
        %v845 = vand.u32 2147483647, %v844
        %v847 = vcvt.s32.f32 %v840
        %v848 = vmul.f32 %v847, %v845
        %v849 = vxor.u32 %v848, 2147483648
        %v850 = vsel %vm729, %v849, %v848
        %v851 = vsub.s32 4, %v827
        %v852 = vsel %vm729, %v851, %v827
        %v853 = vsel %vm728, %v257, %v850
        %v854 = vsel %vm728, 0, %v852
        %v855 = vmul.f32 %v853, %v853
        %v856 = vmul.f32 %v855, -0.001358992
        %v857 = vadd.f32 %v856, 0.041655596
        %v858 = vmul.f32 %v855, %v857
        %v859 = vadd.f32 %v858, -0.4999988
        %v860 = vmul.f32 %v855, %v859
        %v861 = vadd.f32 1.0, %v860
        %v862 = vmul.f32 %v853, %v853
        %v863 = vmul.f32 %v862, -0.00019511016
        %v864 = vadd.f32 %v863, 0.008332121
        %v865 = vmul.f32 %v862, %v864
        %v866 = vadd.f32 %v865, -0.16666654
        %v867 = vmul.f32 %v862, %v866
        %v868 = vadd.f32 %v867, 1.0
        %v869 = vmul.f32 %v868, %v853
        %vm870 = vweird.f32 %v257
        %v871 = vadd.s32 %v854, 3
        %v872 = vand.u32 %v871, 3
        %vm873 = vcmp.lt.s32.totalorder %v872, 2
        %vm874 = vcmp.eq.s32.totalorder %v872, 0
        %v875 = vxor.u32 %v869, 2147483648
        %v876 = vsel %vm874, %v861, %v875
        %vm877 = vcmp.eq.s32.totalorder %v872, 2
        %v878 = vxor.u32 %v861, 2147483648
        %v879 = vsel %vm877, %v878, %v869
        %v880 = vsel %vm873, %v876, %v879
        %v881 = vsel %vm870, nan, %v880
        %v882 = vand.u32 2147483647, %v258
        %vm883 = vcmp.le.f32.partialorder %v882, 0.7853982
        %vm884 = vcmp.lt.s32.totalorder %v258, 0
        %v885 = vand.u32 %v258, 2139095040
        %v886 = vshrl.u32 %v885, 23
        %v887 = vsub.s32 %v886, 127
        %v888 = vand.u32 2147483647, %v258
        %v889 = vand.u32 %v888, 8388607
        %v890 = vor.u32 %v889, 8388608
        %v891 = vsub.s32 0, %v890
        %v892 = vadd.s32 %v887, 1
        %vm893 = vcmp.gt.s32.totalorder %v892, 0
        %v894 = vsel %vm893, %v892, 0
        %v895 = vshrl.u32 %v894, 5
        %v896 = vand.u32 %v894, 31
        %v897 = vsub.s32 32, %v896
        %v898 = vshrl.u32 683565275, %v897
        %v899 = vshll.u32 683565275, %v896
        %v900 = vshrl.u32 2475754826, %v897
        %v901 = vor.u32 %v899, %v900
        %v902 = vshll.u32 2475754826, %v896
        %v903 = vshrl.u32 2131351028, %v897
        %v904 = vor.u32 %v902, %v903
        %v905 = vshll.u32 2131351028, %v896
        %v906 = vshrl.u32 2102212464, %v897
        %v907 = vor.u32 %v905, %v906
        %v908 = vshll.u32 2102212464, %v896
        %v909 = vshrl.u32 920167782, %v897
        %v910 = vor.u32 %v908, %v909
        %v911 = vshll.u32 920167782, %v896
        %v912 = vshrl.u32 1326507024, %v897
        %v913 = vor.u32 %v911, %v912
        %vm914 = vcmp.lt.s32.totalorder %v895, 1
        %vm915 = vcmp.lt.s32.totalorder %v895, 2
        %vm916 = vcmp.lt.s32.totalorder %v895, 3
        %vm917 = vcmp.lt.s32.totalorder %v895, 4
        %v918 = vsel %vm914, %v898, %v901
        %v919 = vsel %vm917, %v907, 2102212464
        %v920 = vsel %vm916, %v904, %v919
        %v921 = vsel %vm915, %v918, %v920
        %v922 = vsel %vm914, %v901, %v904
        %v923 = vsel %vm917, %v910, 920167782
        %v924 = vsel %vm916, %v907, %v923
        %v925 = vsel %vm915, %v922, %v924
        %v926 = vsel %vm914, %v904, %v907
        %v927 = vsel %vm917, %v913, 1326507024
        %v928 = vsel %vm916, %v910, %v927
        %v929 = vsel %vm915, %v926, %v928
        %v930 = vshll.u32 %v890, 8
        %v931 = vand.u32 %v930, 65535
        %v932 = vshrl.u32 %v930, 16
        %v933 = vand.u32 %v929, 65535
        %v934 = vshrl.u32 %v929, 16
        %v935 = vmul.u32 %v931, %v933
        %v936 = vmul.u32 %v931, %v934
        %v937 = vmul.u32 %v932, %v933
        %v938 = vmul.u32 %v932, %v934
        %v939 = vshll.u32 %v936, 16
        %v940 = vshrl.u32 %v936, 16
        %v941 = vshll.u32 %v937, 16
        %v942 = vshrl.u32 %v937, 16
        %vm943 = vc.u32 %v935, %v939
        %v944 = vsel %vm943, 1, 0
        %v945 = vadd.s32 %v935, %v939
        %v946 = vadd.s32 %v938, %v944
        %vm947 = vc.u32 %v945, %v941
        %v948 = vsel %vm947, 1, 0
        %v949 = vadd.s32 %v945, %v941
        %v950 = vadd.s32 %v946, %v948
        %v951 = vadd.s32 %v950, %v940
        %v952 = vadd.s32 %v951, %v942
        %v953 = vand.u32 %v930, 65535
        %v954 = vshrl.u32 %v930, 16
        %v955 = vand.u32 %v925, 65535
        %v956 = vshrl.u32 %v925, 16
        %v957 = vmul.u32 %v953, %v955
        %v958 = vmul.u32 %v953, %v956
        %v959 = vmul.u32 %v954, %v955
        %v960 = vmul.u32 %v954, %v956
        %v961 = vshll.u32 %v958, 16
        %v962 = vshrl.u32 %v958, 16
        %v963 = vshll.u32 %v959, 16
        %v964 = vshrl.u32 %v959, 16
        %vm965 = vc.u32 %v957, %v961
        %v966 = vsel %vm965, 1, 0
        %v967 = vadd.s32 %v957, %v961
        %v968 = vadd.s32 %v960, %v966
        %vm969 = vc.u32 %v967, %v963
        %v970 = vsel %vm969, 1, 0
        %v971 = vadd.s32 %v967, %v963
        %v972 = vadd.s32 %v968, %v970
        %v973 = vadd.s32 %v972, %v962
        %v974 = vadd.s32 %v973, %v964
        %v975 = vmul.u32 %v930, %v921
        %v976 = vadd.s32 %v952, %v971
        %vm977 = vc.u32 %v952, %v971
        %v978 = vadd.s32 %v974, 1
        %v979 = vsel %vm977, %v978, %v974
        %v980 = vadd.s32 %v975, %v979
        %v981 = vadd.s32 %v980, 536870912
        %v982 = vshrl.u32 %v981, 30
        %v983 = vshll.u32 %v982, 30
        %v984 = vsub.s32 %v980, %v983
        %vm985 = vcmp.lt.s32.totalorder %v984, 0
        %v986 = vsub.s32 0, %v984
        %v987 = vsel %vm985, %v986, %v984
        %v988 = vclz %v987
        %v989 = vsub.s32 %v988, 2
        %vm990 = vcmp.gt.s32.totalorder 0, %v989
        %v991 = vsel %vm990, 0, %v989
        %v992 = vsub.s32 32, %v991
        %v993 = vshll.u32 %v984, %v991
        %v994 = vshrl.u32 %v976, %v992
        %v995 = vor.u32 %v993, %v994
        %v996 = vsub.s32 4294967266, %v991
        %v997 = vadd.s32 %v996, 127
        %v998 = vshll.u32 %v997, 23
        %v999 = vor.u32 4788187, %v998
        %v1000 = vand.u32 2147483647, %v999
        %v1002 = vcvt.s32.f32 %v995
        %v1003 = vmul.f32 %v1002, %v1000
        %v1004 = vxor.u32 %v1003, 2147483648
        %v1005 = vsel %vm884, %v1004, %v1003
        %v1006 = vsub.s32 4, %v982
        %v1007 = vsel %vm884, %v1006, %v982
        %v1008 = vsel %vm883, %v258, %v1005
        %v1009 = vsel %vm883, 0, %v1007
        %v1010 = vmul.f32 %v1008, %v1008
        %v1011 = vmul.f32 %v1010, -0.001358992
        %v1012 = vadd.f32 %v1011, 0.041655596
        %v1013 = vmul.f32 %v1010, %v1012
        %v1014 = vadd.f32 %v1013, -0.4999988
        %v1015 = vmul.f32 %v1010, %v1014
        %v1016 = vadd.f32 1.0, %v1015
        %v1017 = vmul.f32 %v1008, %v1008
        %v1018 = vmul.f32 %v1017, -0.00019511016
        %v1019 = vadd.f32 %v1018, 0.008332121
        %v1020 = vmul.f32 %v1017, %v1019
        %v1021 = vadd.f32 %v1020, -0.16666654
        %v1022 = vmul.f32 %v1017, %v1021
        %v1023 = vadd.f32 %v1022, 1.0
        %v1024 = vmul.f32 %v1023, %v1008
        %vm1025 = vweird.f32 %v258
        %v1026 = vadd.s32 %v1009, 3
        %v1027 = vand.u32 %v1026, 3
        %vm1028 = vcmp.lt.s32.totalorder %v1027, 2
        %vm1029 = vcmp.eq.s32.totalorder %v1027, 0
        %v1030 = vxor.u32 %v1024, 2147483648
        %v1031 = vsel %vm1029, %v1016, %v1030
        %vm1032 = vcmp.eq.s32.totalorder %v1027, 2
        %v1033 = vxor.u32 %v1016, 2147483648
        %v1034 = vsel %vm1032, %v1033, %v1024
        %v1035 = vsel %vm1028, %v1031, %v1034
        %v1036 = vsel %vm1025, nan, %v1035
        %v1037 = vand.u32 2147483647, %v259
        %vm1038 = vcmp.le.f32.partialorder %v1037, 0.7853982
        %vm1039 = vcmp.lt.s32.totalorder %v259, 0
        %v1040 = vand.u32 %v259, 2139095040
        %v1041 = vshrl.u32 %v1040, 23
        %v1042 = vsub.s32 %v1041, 127
        %v1043 = vand.u32 2147483647, %v259
        %v1044 = vand.u32 %v1043, 8388607
        %v1045 = vor.u32 %v1044, 8388608
        %v1046 = vsub.s32 0, %v1045
        %v1047 = vadd.s32 %v1042, 1
        %vm1048 = vcmp.gt.s32.totalorder %v1047, 0
        %v1049 = vsel %vm1048, %v1047, 0
        %v1050 = vshrl.u32 %v1049, 5
        %v1051 = vand.u32 %v1049, 31
        %v1052 = vsub.s32 32, %v1051
        %v1053 = vshrl.u32 683565275, %v1052
        %v1054 = vshll.u32 683565275, %v1051
        %v1055 = vshrl.u32 2475754826, %v1052
        %v1056 = vor.u32 %v1054, %v1055
        %v1057 = vshll.u32 2475754826, %v1051
        %v1058 = vshrl.u32 2131351028, %v1052
        %v1059 = vor.u32 %v1057, %v1058
        %v1060 = vshll.u32 2131351028, %v1051
        %v1061 = vshrl.u32 2102212464, %v1052
        %v1062 = vor.u32 %v1060, %v1061
        %v1063 = vshll.u32 2102212464, %v1051
        %v1064 = vshrl.u32 920167782, %v1052
        %v1065 = vor.u32 %v1063, %v1064
        %v1066 = vshll.u32 920167782, %v1051
        %v1067 = vshrl.u32 1326507024, %v1052
        %v1068 = vor.u32 %v1066, %v1067
        %vm1069 = vcmp.lt.s32.totalorder %v1050, 1
        %vm1070 = vcmp.lt.s32.totalorder %v1050, 2
        %vm1071 = vcmp.lt.s32.totalorder %v1050, 3
        %vm1072 = vcmp.lt.s32.totalorder %v1050, 4
        %v1073 = vsel %vm1069, %v1053, %v1056
        %v1074 = vsel %vm1072, %v1062, 2102212464
        %v1075 = vsel %vm1071, %v1059, %v1074
        %v1076 = vsel %vm1070, %v1073, %v1075
        %v1077 = vsel %vm1069, %v1056, %v1059
        %v1078 = vsel %vm1072, %v1065, 920167782
        %v1079 = vsel %vm1071, %v1062, %v1078
        %v1080 = vsel %vm1070, %v1077, %v1079
        %v1081 = vsel %vm1069, %v1059, %v1062
        %v1082 = vsel %vm1072, %v1068, 1326507024
        %v1083 = vsel %vm1071, %v1065, %v1082
        %v1084 = vsel %vm1070, %v1081, %v1083
        %v1085 = vshll.u32 %v1045, 8
        %v1086 = vand.u32 %v1085, 65535
        %v1087 = vshrl.u32 %v1085, 16
        %v1088 = vand.u32 %v1084, 65535
        %v1089 = vshrl.u32 %v1084, 16
        %v1090 = vmul.u32 %v1086, %v1088
        %v1091 = vmul.u32 %v1086, %v1089
        %v1092 = vmul.u32 %v1087, %v1088
        %v1093 = vmul.u32 %v1087, %v1089
        %v1094 = vshll.u32 %v1091, 16
        %v1095 = vshrl.u32 %v1091, 16
        %v1096 = vshll.u32 %v1092, 16
        %v1097 = vshrl.u32 %v1092, 16
        %vm1098 = vc.u32 %v1090, %v1094
        %v1099 = vsel %vm1098, 1, 0
        %v1100 = vadd.s32 %v1090, %v1094
        %v1101 = vadd.s32 %v1093, %v1099
        %vm1102 = vc.u32 %v1100, %v1096
        %v1103 = vsel %vm1102, 1, 0
        %v1104 = vadd.s32 %v1100, %v1096
        %v1105 = vadd.s32 %v1101, %v1103
        %v1106 = vadd.s32 %v1105, %v1095
        %v1107 = vadd.s32 %v1106, %v1097
        %v1108 = vand.u32 %v1085, 65535
        %v1109 = vshrl.u32 %v1085, 16
        %v1110 = vand.u32 %v1080, 65535
        %v1111 = vshrl.u32 %v1080, 16
        %v1112 = vmul.u32 %v1108, %v1110
        %v1113 = vmul.u32 %v1108, %v1111
        %v1114 = vmul.u32 %v1109, %v1110
        %v1115 = vmul.u32 %v1109, %v1111
        %v1116 = vshll.u32 %v1113, 16
        %v1117 = vshrl.u32 %v1113, 16
        %v1118 = vshll.u32 %v1114, 16
        %v1119 = vshrl.u32 %v1114, 16
        %vm1120 = vc.u32 %v1112, %v1116
        %v1121 = vsel %vm1120, 1, 0
        %v1122 = vadd.s32 %v1112, %v1116
        %v1123 = vadd.s32 %v1115, %v1121
        %vm1124 = vc.u32 %v1122, %v1118
        %v1125 = vsel %vm1124, 1, 0
        %v1126 = vadd.s32 %v1122, %v1118
        %v1127 = vadd.s32 %v1123, %v1125
        %v1128 = vadd.s32 %v1127, %v1117
        %v1129 = vadd.s32 %v1128, %v1119
        %v1130 = vmul.u32 %v1085, %v1076
        %v1131 = vadd.s32 %v1107, %v1126
        %vm1132 = vc.u32 %v1107, %v1126
        %v1133 = vadd.s32 %v1129, 1
        %v1134 = vsel %vm1132, %v1133, %v1129
        %v1135 = vadd.s32 %v1130, %v1134
        %v1136 = vadd.s32 %v1135, 536870912
        %v1137 = vshrl.u32 %v1136, 30
        %v1138 = vshll.u32 %v1137, 30
        %v1139 = vsub.s32 %v1135, %v1138
        %vm1140 = vcmp.lt.s32.totalorder %v1139, 0
        %v1141 = vsub.s32 0, %v1139
        %v1142 = vsel %vm1140, %v1141, %v1139
        %v1143 = vclz %v1142
        %v1144 = vsub.s32 %v1143, 2
        %vm1145 = vcmp.gt.s32.totalorder 0, %v1144
        %v1146 = vsel %vm1145, 0, %v1144
        %v1147 = vsub.s32 32, %v1146
        %v1148 = vshll.u32 %v1139, %v1146
        %v1149 = vshrl.u32 %v1131, %v1147
        %v1150 = vor.u32 %v1148, %v1149
        %v1151 = vsub.s32 4294967266, %v1146
        %v1152 = vadd.s32 %v1151, 127
        %v1153 = vshll.u32 %v1152, 23
        %v1154 = vor.u32 4788187, %v1153
        %v1155 = vand.u32 2147483647, %v1154
        %v1157 = vcvt.s32.f32 %v1150
        %v1158 = vmul.f32 %v1157, %v1155
        %v1159 = vxor.u32 %v1158, 2147483648
        %v1160 = vsel %vm1039, %v1159, %v1158
        %v1161 = vsub.s32 4, %v1137
        %v1162 = vsel %vm1039, %v1161, %v1137
        %v1163 = vsel %vm1038, %v259, %v1160
        %v1164 = vsel %vm1038, 0, %v1162
        %v1165 = vmul.f32 %v1163, %v1163
        %v1166 = vmul.f32 %v1165, -0.001358992
        %v1167 = vadd.f32 %v1166, 0.041655596
        %v1168 = vmul.f32 %v1165, %v1167
        %v1169 = vadd.f32 %v1168, -0.4999988
        %v1170 = vmul.f32 %v1165, %v1169
        %v1171 = vadd.f32 1.0, %v1170
        %v1172 = vmul.f32 %v1163, %v1163
        %v1173 = vmul.f32 %v1172, -0.00019511016
        %v1174 = vadd.f32 %v1173, 0.008332121
        %v1175 = vmul.f32 %v1172, %v1174
        %v1176 = vadd.f32 %v1175, -0.16666654
        %v1177 = vmul.f32 %v1172, %v1176
        %v1178 = vadd.f32 %v1177, 1.0
        %v1179 = vmul.f32 %v1178, %v1163
        %vm1180 = vweird.f32 %v259
        %v1181 = vadd.s32 %v1164, 3
        %v1182 = vand.u32 %v1181, 3
        %vm1183 = vcmp.lt.s32.totalorder %v1182, 2
        %vm1184 = vcmp.eq.s32.totalorder %v1182, 0
        %v1185 = vxor.u32 %v1179, 2147483648
        %v1186 = vsel %vm1184, %v1171, %v1185
        %vm1187 = vcmp.eq.s32.totalorder %v1182, 2
        %v1188 = vxor.u32 %v1171, 2147483648
        %v1189 = vsel %vm1187, %v1188, %v1179
        %v1190 = vsel %vm1183, %v1186, %v1189
        %v1191 = vsel %vm1180, nan, %v1190
        %v1192 = vand.u32 2147483647, %v260
        %vm1193 = vcmp.le.f32.partialorder %v1192, 0.7853982
        %vm1194 = vcmp.lt.s32.totalorder %v260, 0
        %v1195 = vand.u32 %v260, 2139095040
        %v1196 = vshrl.u32 %v1195, 23
        %v1197 = vsub.s32 %v1196, 127
        %v1198 = vand.u32 2147483647, %v260
        %v1199 = vand.u32 %v1198, 8388607
        %v1200 = vor.u32 %v1199, 8388608
        %v1201 = vsub.s32 0, %v1200
        %v1202 = vadd.s32 %v1197, 1
        %vm1203 = vcmp.gt.s32.totalorder %v1202, 0
        %v1204 = vsel %vm1203, %v1202, 0
        %v1205 = vshrl.u32 %v1204, 5
        %v1206 = vand.u32 %v1204, 31
        %v1207 = vsub.s32 32, %v1206
        %v1208 = vshrl.u32 683565275, %v1207
        %v1209 = vshll.u32 683565275, %v1206
        %v1210 = vshrl.u32 2475754826, %v1207
        %v1211 = vor.u32 %v1209, %v1210
        %v1212 = vshll.u32 2475754826, %v1206
        %v1213 = vshrl.u32 2131351028, %v1207
        %v1214 = vor.u32 %v1212, %v1213
        %v1215 = vshll.u32 2131351028, %v1206
        %v1216 = vshrl.u32 2102212464, %v1207
        %v1217 = vor.u32 %v1215, %v1216
        %v1218 = vshll.u32 2102212464, %v1206
        %v1219 = vshrl.u32 920167782, %v1207
        %v1220 = vor.u32 %v1218, %v1219
        %v1221 = vshll.u32 920167782, %v1206
        %v1222 = vshrl.u32 1326507024, %v1207
        %v1223 = vor.u32 %v1221, %v1222
        %vm1224 = vcmp.lt.s32.totalorder %v1205, 1
        %vm1225 = vcmp.lt.s32.totalorder %v1205, 2
        %vm1226 = vcmp.lt.s32.totalorder %v1205, 3
        %vm1227 = vcmp.lt.s32.totalorder %v1205, 4
        %v1228 = vsel %vm1224, %v1208, %v1211
        %v1229 = vsel %vm1227, %v1217, 2102212464
        %v1230 = vsel %vm1226, %v1214, %v1229
        %v1231 = vsel %vm1225, %v1228, %v1230
        %v1232 = vsel %vm1224, %v1211, %v1214
        %v1233 = vsel %vm1227, %v1220, 920167782
        %v1234 = vsel %vm1226, %v1217, %v1233
        %v1235 = vsel %vm1225, %v1232, %v1234
        %v1236 = vsel %vm1224, %v1214, %v1217
        %v1237 = vsel %vm1227, %v1223, 1326507024
        %v1238 = vsel %vm1226, %v1220, %v1237
        %v1239 = vsel %vm1225, %v1236, %v1238
        %v1240 = vshll.u32 %v1200, 8
        %v1241 = vand.u32 %v1240, 65535
        %v1242 = vshrl.u32 %v1240, 16
        %v1243 = vand.u32 %v1239, 65535
        %v1244 = vshrl.u32 %v1239, 16
        %v1245 = vmul.u32 %v1241, %v1243
        %v1246 = vmul.u32 %v1241, %v1244
        %v1247 = vmul.u32 %v1242, %v1243
        %v1248 = vmul.u32 %v1242, %v1244
        %v1249 = vshll.u32 %v1246, 16
        %v1250 = vshrl.u32 %v1246, 16
        %v1251 = vshll.u32 %v1247, 16
        %v1252 = vshrl.u32 %v1247, 16
        %vm1253 = vc.u32 %v1245, %v1249
        %v1254 = vsel %vm1253, 1, 0
        %v1255 = vadd.s32 %v1245, %v1249
        %v1256 = vadd.s32 %v1248, %v1254
        %vm1257 = vc.u32 %v1255, %v1251
        %v1258 = vsel %vm1257, 1, 0
        %v1259 = vadd.s32 %v1255, %v1251
        %v1260 = vadd.s32 %v1256, %v1258
        %v1261 = vadd.s32 %v1260, %v1250
        %v1262 = vadd.s32 %v1261, %v1252
        %v1263 = vand.u32 %v1240, 65535
        %v1264 = vshrl.u32 %v1240, 16
        %v1265 = vand.u32 %v1235, 65535
        %v1266 = vshrl.u32 %v1235, 16
        %v1267 = vmul.u32 %v1263, %v1265
        %v1268 = vmul.u32 %v1263, %v1266
        %v1269 = vmul.u32 %v1264, %v1265
        %v1270 = vmul.u32 %v1264, %v1266
        %v1271 = vshll.u32 %v1268, 16
        %v1272 = vshrl.u32 %v1268, 16
        %v1273 = vshll.u32 %v1269, 16
        %v1274 = vshrl.u32 %v1269, 16
        %vm1275 = vc.u32 %v1267, %v1271
        %v1276 = vsel %vm1275, 1, 0
        %v1277 = vadd.s32 %v1267, %v1271
        %v1278 = vadd.s32 %v1270, %v1276
        %vm1279 = vc.u32 %v1277, %v1273
        %v1280 = vsel %vm1279, 1, 0
        %v1281 = vadd.s32 %v1277, %v1273
        %v1282 = vadd.s32 %v1278, %v1280
        %v1283 = vadd.s32 %v1282, %v1272
        %v1284 = vadd.s32 %v1283, %v1274
        %v1285 = vmul.u32 %v1240, %v1231
        %v1286 = vadd.s32 %v1262, %v1281
        %vm1287 = vc.u32 %v1262, %v1281
        %v1288 = vadd.s32 %v1284, 1
        %v1289 = vsel %vm1287, %v1288, %v1284
        %v1290 = vadd.s32 %v1285, %v1289
        %v1291 = vadd.s32 %v1290, 536870912
        %v1292 = vshrl.u32 %v1291, 30
        %v1293 = vshll.u32 %v1292, 30
        %v1294 = vsub.s32 %v1290, %v1293
        %vm1295 = vcmp.lt.s32.totalorder %v1294, 0
        %v1296 = vsub.s32 0, %v1294
        %v1297 = vsel %vm1295, %v1296, %v1294
        %v1298 = vclz %v1297
        %v1299 = vsub.s32 %v1298, 2
        %vm1300 = vcmp.gt.s32.totalorder 0, %v1299
        %v1301 = vsel %vm1300, 0, %v1299
        %v1302 = vsub.s32 32, %v1301
        %v1303 = vshll.u32 %v1294, %v1301
        %v1304 = vshrl.u32 %v1286, %v1302
        %v1305 = vor.u32 %v1303, %v1304
        %v1306 = vsub.s32 4294967266, %v1301
        %v1307 = vadd.s32 %v1306, 127
        %v1308 = vshll.u32 %v1307, 23
        %v1309 = vor.u32 4788187, %v1308
        %v1310 = vand.u32 2147483647, %v1309
        %v1312 = vcvt.s32.f32 %v1305
        %v1313 = vmul.f32 %v1312, %v1310
        %v1314 = vxor.u32 %v1313, 2147483648
        %v1315 = vsel %vm1194, %v1314, %v1313
        %v1316 = vsub.s32 4, %v1292
        %v1317 = vsel %vm1194, %v1316, %v1292
        %v1318 = vsel %vm1193, %v260, %v1315
        %v1319 = vsel %vm1193, 0, %v1317
        %v1320 = vmul.f32 %v1318, %v1318
        %v1321 = vmul.f32 %v1320, -0.001358992
        %v1322 = vadd.f32 %v1321, 0.041655596
        %v1323 = vmul.f32 %v1320, %v1322
        %v1324 = vadd.f32 %v1323, -0.4999988
        %v1325 = vmul.f32 %v1320, %v1324
        %v1326 = vadd.f32 1.0, %v1325
        %v1327 = vmul.f32 %v1318, %v1318
        %v1328 = vmul.f32 %v1327, -0.00019511016
        %v1329 = vadd.f32 %v1328, 0.008332121
        %v1330 = vmul.f32 %v1327, %v1329
        %v1331 = vadd.f32 %v1330, -0.16666654
        %v1332 = vmul.f32 %v1327, %v1331
        %v1333 = vadd.f32 %v1332, 1.0
        %v1334 = vmul.f32 %v1333, %v1318
        %vm1335 = vweird.f32 %v260
        %v1336 = vadd.s32 %v1319, 3
        %v1337 = vand.u32 %v1336, 3
        %vm1338 = vcmp.lt.s32.totalorder %v1337, 2
        %vm1339 = vcmp.eq.s32.totalorder %v1337, 0
        %v1340 = vxor.u32 %v1334, 2147483648
        %v1341 = vsel %vm1339, %v1326, %v1340
        %vm1342 = vcmp.eq.s32.totalorder %v1337, 2
        %v1343 = vxor.u32 %v1326, 2147483648
        %v1344 = vsel %vm1342, %v1343, %v1334
        %v1345 = vsel %vm1338, %v1341, %v1344
        %v1346 = vsel %vm1335, nan, %v1345
        %v1347 = vand.u32 2147483647, %v261
        %vm1348 = vcmp.le.f32.partialorder %v1347, 0.7853982
        %vm1349 = vcmp.lt.s32.totalorder %v261, 0
        %v1350 = vand.u32 %v261, 2139095040
        %v1351 = vshrl.u32 %v1350, 23
        %v1352 = vsub.s32 %v1351, 127
        %v1353 = vand.u32 2147483647, %v261
        %v1354 = vand.u32 %v1353, 8388607
        %v1355 = vor.u32 %v1354, 8388608
        %v1356 = vsub.s32 0, %v1355
        %v1357 = vadd.s32 %v1352, 1
        %vm1358 = vcmp.gt.s32.totalorder %v1357, 0
        %v1359 = vsel %vm1358, %v1357, 0
        %v1360 = vshrl.u32 %v1359, 5
        %v1361 = vand.u32 %v1359, 31
        %v1362 = vsub.s32 32, %v1361
        %v1363 = vshrl.u32 683565275, %v1362
        %v1364 = vshll.u32 683565275, %v1361
        %v1365 = vshrl.u32 2475754826, %v1362
        %v1366 = vor.u32 %v1364, %v1365
        %v1367 = vshll.u32 2475754826, %v1361
        %v1368 = vshrl.u32 2131351028, %v1362
        %v1369 = vor.u32 %v1367, %v1368
        %v1370 = vshll.u32 2131351028, %v1361
        %v1371 = vshrl.u32 2102212464, %v1362
        %v1372 = vor.u32 %v1370, %v1371
        %v1373 = vshll.u32 2102212464, %v1361
        %v1374 = vshrl.u32 920167782, %v1362
        %v1375 = vor.u32 %v1373, %v1374
        %v1376 = vshll.u32 920167782, %v1361
        %v1377 = vshrl.u32 1326507024, %v1362
        %v1378 = vor.u32 %v1376, %v1377
        %vm1379 = vcmp.lt.s32.totalorder %v1360, 1
        %vm1380 = vcmp.lt.s32.totalorder %v1360, 2
        %vm1381 = vcmp.lt.s32.totalorder %v1360, 3
        %vm1382 = vcmp.lt.s32.totalorder %v1360, 4
        %v1383 = vsel %vm1379, %v1363, %v1366
        %v1384 = vsel %vm1382, %v1372, 2102212464
        %v1385 = vsel %vm1381, %v1369, %v1384
        %v1386 = vsel %vm1380, %v1383, %v1385
        %v1387 = vsel %vm1379, %v1366, %v1369
        %v1388 = vsel %vm1382, %v1375, 920167782
        %v1389 = vsel %vm1381, %v1372, %v1388
        %v1390 = vsel %vm1380, %v1387, %v1389
        %v1391 = vsel %vm1379, %v1369, %v1372
        %v1392 = vsel %vm1382, %v1378, 1326507024
        %v1393 = vsel %vm1381, %v1375, %v1392
        %v1394 = vsel %vm1380, %v1391, %v1393
        %v1395 = vshll.u32 %v1355, 8
        %v1396 = vand.u32 %v1395, 65535
        %v1397 = vshrl.u32 %v1395, 16
        %v1398 = vand.u32 %v1394, 65535
        %v1399 = vshrl.u32 %v1394, 16
        %v1400 = vmul.u32 %v1396, %v1398
        %v1401 = vmul.u32 %v1396, %v1399
        %v1402 = vmul.u32 %v1397, %v1398
        %v1403 = vmul.u32 %v1397, %v1399
        %v1404 = vshll.u32 %v1401, 16
        %v1405 = vshrl.u32 %v1401, 16
        %v1406 = vshll.u32 %v1402, 16
        %v1407 = vshrl.u32 %v1402, 16
        %vm1408 = vc.u32 %v1400, %v1404
        %v1409 = vsel %vm1408, 1, 0
        %v1410 = vadd.s32 %v1400, %v1404
        %v1411 = vadd.s32 %v1403, %v1409
        %vm1412 = vc.u32 %v1410, %v1406
        %v1413 = vsel %vm1412, 1, 0
        %v1414 = vadd.s32 %v1410, %v1406
        %v1415 = vadd.s32 %v1411, %v1413
        %v1416 = vadd.s32 %v1415, %v1405
        %v1417 = vadd.s32 %v1416, %v1407
        %v1418 = vand.u32 %v1395, 65535
        %v1419 = vshrl.u32 %v1395, 16
        %v1420 = vand.u32 %v1390, 65535
        %v1421 = vshrl.u32 %v1390, 16
        %v1422 = vmul.u32 %v1418, %v1420
        %v1423 = vmul.u32 %v1418, %v1421
        %v1424 = vmul.u32 %v1419, %v1420
        %v1425 = vmul.u32 %v1419, %v1421
        %v1426 = vshll.u32 %v1423, 16
        %v1427 = vshrl.u32 %v1423, 16
        %v1428 = vshll.u32 %v1424, 16
        %v1429 = vshrl.u32 %v1424, 16
        %vm1430 = vc.u32 %v1422, %v1426
        %v1431 = vsel %vm1430, 1, 0
        %v1432 = vadd.s32 %v1422, %v1426
        %v1433 = vadd.s32 %v1425, %v1431
        %vm1434 = vc.u32 %v1432, %v1428
        %v1435 = vsel %vm1434, 1, 0
        %v1436 = vadd.s32 %v1432, %v1428
        %v1437 = vadd.s32 %v1433, %v1435
        %v1438 = vadd.s32 %v1437, %v1427
        %v1439 = vadd.s32 %v1438, %v1429
        %v1440 = vmul.u32 %v1395, %v1386
        %v1441 = vadd.s32 %v1417, %v1436
        %vm1442 = vc.u32 %v1417, %v1436
        %v1443 = vadd.s32 %v1439, 1
        %v1444 = vsel %vm1442, %v1443, %v1439
        %v1445 = vadd.s32 %v1440, %v1444
        %v1446 = vadd.s32 %v1445, 536870912
        %v1447 = vshrl.u32 %v1446, 30
        %v1448 = vshll.u32 %v1447, 30
        %v1449 = vsub.s32 %v1445, %v1448
        %vm1450 = vcmp.lt.s32.totalorder %v1449, 0
        %v1451 = vsub.s32 0, %v1449
        %v1452 = vsel %vm1450, %v1451, %v1449
        %v1453 = vclz %v1452
        %v1454 = vsub.s32 %v1453, 2
        %vm1455 = vcmp.gt.s32.totalorder 0, %v1454
        %v1456 = vsel %vm1455, 0, %v1454
        %v1457 = vsub.s32 32, %v1456
        %v1458 = vshll.u32 %v1449, %v1456
        %v1459 = vshrl.u32 %v1441, %v1457
        %v1460 = vor.u32 %v1458, %v1459
        %v1461 = vsub.s32 4294967266, %v1456
        %v1462 = vadd.s32 %v1461, 127
        %v1463 = vshll.u32 %v1462, 23
        %v1464 = vor.u32 4788187, %v1463
        %v1465 = vand.u32 2147483647, %v1464
        %v1467 = vcvt.s32.f32 %v1460
        %v1468 = vmul.f32 %v1467, %v1465
        %v1469 = vxor.u32 %v1468, 2147483648
        %v1470 = vsel %vm1349, %v1469, %v1468
        %v1471 = vsub.s32 4, %v1447
        %v1472 = vsel %vm1349, %v1471, %v1447
        %v1473 = vsel %vm1348, %v261, %v1470
        %v1474 = vsel %vm1348, 0, %v1472
        %v1475 = vmul.f32 %v1473, %v1473
        %v1476 = vmul.f32 %v1475, -0.001358992
        %v1477 = vadd.f32 %v1476, 0.041655596
        %v1478 = vmul.f32 %v1475, %v1477
        %v1479 = vadd.f32 %v1478, -0.4999988
        %v1480 = vmul.f32 %v1475, %v1479
        %v1481 = vadd.f32 1.0, %v1480
        %v1482 = vmul.f32 %v1473, %v1473
        %v1483 = vmul.f32 %v1482, -0.00019511016
        %v1484 = vadd.f32 %v1483, 0.008332121
        %v1485 = vmul.f32 %v1482, %v1484
        %v1486 = vadd.f32 %v1485, -0.16666654
        %v1487 = vmul.f32 %v1482, %v1486
        %v1488 = vadd.f32 %v1487, 1.0
        %v1489 = vmul.f32 %v1488, %v1473
        %vm1490 = vweird.f32 %v261
        %v1491 = vadd.s32 %v1474, 3
        %v1492 = vand.u32 %v1491, 3
        %vm1493 = vcmp.lt.s32.totalorder %v1492, 2
        %vm1494 = vcmp.eq.s32.totalorder %v1492, 0
        %v1495 = vxor.u32 %v1489, 2147483648
        %v1496 = vsel %vm1494, %v1481, %v1495
        %vm1497 = vcmp.eq.s32.totalorder %v1492, 2
        %v1498 = vxor.u32 %v1481, 2147483648
        %v1499 = vsel %vm1497, %v1498, %v1489
        %v1500 = vsel %vm1493, %v1496, %v1499
        %v1501 = vsel %vm1490, nan, %v1500
        %1502 = vst [vmem:[%s164] sm:$0xff] %v416
        %1503 = vst [vmem:[%s164 + $0x8] sm:$0xff] %v571
        %1504 = vst [vmem:[%s164 + $0x10] sm:$0xff] %v726
        %1505 = vst [vmem:[%s164 + $0x18] sm:$0xff] %v881
        %1506 = vst [vmem:[%s164 + $0x20] sm:$0xff] %v1036
        %1507 = vst [vmem:[%s164 + $0x28] sm:$0xff] %v1191
        %1508 = vst [vmem:[%s164 + $0x30] sm:$0xff] %v1346
        %1509 = vst [vmem:[%s164 + $0x38] sm:$0xff] %v1501
        %s1510 = sand.u32 %s93, 1
        %s1511 = scalar_lea.sflag [#allocation3], %s1510
        %s1512 = sand.u32 %s93, 1
        %s1513 = smul.addr %s1512, 64
        %s1514 = scalar_lea.vmem [#allocation2], %s1513
        // Predicated region
        $region33: #{tpu_custom_call.1} parent=31 // pred_check
          %p1515 = pneg %p103
        $region34: #{tpu_custom_call.1} parent=31 // pred_check_branch
          %1517 = sbr.rel (%p1515) target = $region36
        $region35: #{tpu_custom_call.1} parent=31 // pred_region
          %s1518 = smul.u32 8, %s17
          %1520 = vsyncadd %s1511, 0
          %s1521 = smul.addr %s1518, 8
          %s1522 = scalar_lea.hbm %s3, %s1521
          %s1523 = sshll.u32 %s1514, 4
          %s1524 = int_to_ptr.vmem [resolvable:$true] %s1523
          %s1525 = sshll.u32 %s1522, 4
          %s1526 = int_to_ptr.hbm [resolvable:$true] %s1525
          %1531 = dma.vmem_to_hbm [thread:$0]  %s1524, 1024, %s1526, %s1511, 128, 128, 8
        $region36: #{tpu_custom_call.1} parent=31 // pred_fallthru
          _
      $region32: #{tpu_custom_call.1} parent=5 // pred_fallthru
        _
      %p1532 = scmp.le.s32.totalorder 2, %s12
      // Predicated region
      $region37: #{tpu_custom_call.1} parent=5 // pred_check
        %p1533 = pneg %p1532
      $region38: #{tpu_custom_call.1} parent=5 // pred_check_branch
        %1535 = sbr.rel (%p1533) target = $region40
      $region39: #{tpu_custom_call.1} parent=5 // pred_region
        %s1536 = ssub.s32 %s12, 2
        // Predicated region
        $region41: #{tpu_custom_call.1} parent=39 // pred_check
          %p1537 = pneg %p109
        $region42: #{tpu_custom_call.1} parent=39 // pred_check_branch
          %1539 = sbr.rel (%p1537) target = $region44
        $region43: #{tpu_custom_call.1} parent=39 // pred_region
          %s1540 = sand.u32 %s94, 1
          %s1541 = scalar_lea.sflag [#allocation3], %s1540
          %s1542 = sand.u32 %s94, 1
          %s1543 = smul.addr %s1542, 64
          %s1544 = scalar_lea.vmem [#allocation2], %s1543
          %1546 = dma.done %s1541, 1024
        $region44: #{tpu_custom_call.1} parent=39 // pred_fallthru
          _
      $region40: #{tpu_custom_call.1} parent=5 // pred_fallthru
        _
    $region6: #{tpu_custom_call.1} parent=1 // loop_footer
      %s16 = sadd.s32 1, %s12
    $region7: #{tpu_custom_call.1} parent=1 // loop_footer_branch
      %11 = sbr.rel target = $region3
    $region8: #{tpu_custom_call.1} parent=1 // loop_exit
      _
    %1547 = vsyncpa [#allocation3], 1
    %s1548 = scalar_lea.sflag [#allocation3], 1
    %1549 = vsyncpa %s1548, 1

</llo_original>
